<compile_context>
chip_gen: v7x
topology: tpu7x:2x2x1
jax: 0.10.0
libtpu: 0.0.40
codegen_flags: <defaults>
</compile_context>

<pallas_src>
import functools

import jax
import jax.numpy as jnp
from jax.experimental import pallas as pl
from jax.experimental.pallas import tpu as pltpu

_LANE = 128      # vreg lane width
_SUBLANE = 8     # vreg sublane width (f32)


def _round_up(n: int, m: int) -> int:
    return ((n + m - 1) // m) * m


def _fused_mlp_kernel(x_ref, *refs, num_layers: int, negative_slope: float = 0.01):
    """Unrolled y = Ln(... LeakyReLU(L1(LeakyReLU(L0(x)))) ...) for one batch tile.

    refs = (w0, b0, w1, b1, ..., w_{n-1}, b_{n-1}, o_ref)
    Each w_i is pre-transposed (Din_i, Dout_i) with Dout_i a multiple of 128;
    b_i is (1, Dout_i) f32. Matmul operands use w.dtype (f32 or bf16), the
    accumulation and all elementwise math stay f32.
    """
    o_ref = refs[-1]
    h = x_ref[...].astype(jnp.float32)
    for i in range(num_layers):
        w = refs[2 * i][...]
        b = refs[2 * i + 1][...].astype(jnp.float32)          # (1, Dout) broadcasts
        lhs = h if w.dtype == jnp.float32 else h.astype(w.dtype)
        h = jnp.dot(lhs, w, preferred_element_type=jnp.float32) + b
        if i != num_layers - 1:
            h = jnp.where(h >= 0.0, h, negative_slope * h)    # LeakyReLU(0.01)
    o_ref[...] = h.astype(o_ref.dtype)


def classifier_forward(x, params, num_classes, *, tile_m: int = 2048):
    """Fused forward pass.

    x:      (B, input_size)
    params: list of (W, b) with W pre-transposed (Din, Dout_pad), b (1, Dout_pad),
            padded widths zero-filled (see init_classifier_params).
    Returns (B, num_classes).
    """
    B, Din = x.shape
    num_layers = len(params)
    C_pad = params[-1][0].shape[1]

    # Biggest sublane-aligned batch tile <= tile_m; cdiv grid keeps the
    # pipeline for ragged batches (no single giant block, no wrapper pad).
    tm = min(tile_m, _round_up(B, _SUBLANE))
    if B > _SUBLANE and pl.cdiv(B, tm) < 2:
        # v7x megacore: give the "parallel" batch axis >= 2 steps when possible.
        tm = _round_up(pl.cdiv(B, 2), _SUBLANE)
    grid = (pl.cdiv(B, tm),)

    in_specs = [pl.BlockSpec((tm, Din), lambda i: (i, 0))]
    flat_args = [x]
    for (w, b) in params:
        # Constant index_map -> weights/biases are fetched once and stay
        # VMEM-resident across grid steps (they are a few KB-MB total).
        in_specs.append(pl.BlockSpec(w.shape, lambda i: (0, 0)))
        in_specs.append(pl.BlockSpec(b.shape, lambda i: (0, 0)))
        flat_args.append(w)
        flat_args.append(b)

    kernel = functools.partial(_fused_mlp_kernel, num_layers=num_layers)
    out = pl.pallas_call(
        kernel,
        out_shape=jax.ShapeDtypeStruct((B, C_pad), x.dtype),
        grid=grid,
        in_specs=in_specs,
        out_specs=pl.BlockSpec((tm, C_pad), lambda i: (i, 0)),  # lane-dense store
        compiler_params=pltpu.CompilerParams(
            dimension_semantics=("parallel",)),
    )(*flat_args)

    # Padded class lanes are exactly zero; slice them off (tiny copy).
    return out[:, :num_classes]


def init_classifier_params(key, input_size, hidden, num_classes,
                           weight_dtype=jnp.float32):
    """nn.Linear-style init, stored kernel-ready.

    W as (Din, Dout_pad), b as (1, Dout_pad) with every output width padded to
    a multiple of 128. Padded rows/cols and bias pads are zero, so the extra
    lanes contribute nothing to the math. Biases stay f32 (elementwise path);
    weights may be bf16 for the MXU fast path on v6e/v7x.
    """
    params = []
    dims = [input_size] + list(hidden) + [num_classes]
    din_pad = input_size                      # x's feature dim is left as-is
    for layer in range(len(dims) - 1):
        din, dout = dims[layer], dims[layer + 1]
        dout_pad = _round_up(dout, _LANE)
        key, kw, kb = jax.random.split(key, 3)
        bound = 1.0 / (din ** 0.5)
        w = jax.random.uniform(kw, (din, dout), dtype=jnp.float32,
                               minval=-bound, maxval=bound)
        b = jax.random.uniform(kb, (1, dout), dtype=jnp.float32,
                               minval=-bound, maxval=bound)
        w = jnp.pad(w, ((0, din_pad - din), (0, dout_pad - dout)))
        b = jnp.pad(b, ((0, 0), (0, dout_pad - dout)))
        params.append((w.astype(weight_dtype), b))
        din_pad = dout_pad
    return params


def _reference_forward(x, params, num_classes):
    """Pure-JAX reference with identical dtype handling."""
    h = x.astype(jnp.float32)
    n = len(params)
    for i, (w, b) in enumerate(params):
        lhs = h if w.dtype == jnp.float32 else h.astype(w.dtype)
        h = jnp.dot(lhs, w, preferred_element_type=jnp.float32) + b
        if i != n - 1:
            h = jnp.where(h >= 0.0, h, 0.01 * h)
    return h[:, :num_classes]


if __name__ == "__main__":
    key = jax.random.PRNGKey(0)

    # Small shapes consistent with the module: feature vector in, classes out.
    batch_size = 16                     # splits into 2 grid steps (megacore path)
    input_size = 32
    hidden = [32, 24, 16, 12, 8]
    num_classes = 2

    key, kx, kp = jax.random.split(key, 3)
    x = jax.random.normal(kx, (batch_size, input_size), dtype=jnp.float32)

    # f32 weights: bit-tight check against the reference.
    params = init_classifier_params(kp, input_size, hidden, num_classes)
    out = jax.block_until_ready(classifier_forward(x, params, num_classes))
    assert out.shape == (batch_size, num_classes)
    ref = _reference_forward(x, params, num_classes)
    assert jnp.allclose(out, ref, atol=1e-5, rtol=1e-5)

    # Ragged batch (partial last block; no wrapper pad/slice HBM copies).
    x_odd = x[:5]
    out_odd = jax.block_until_ready(classifier_forward(x_odd, params, num_classes))
    assert out_odd.shape == (5, num_classes)
    assert jnp.allclose(out_odd, _reference_forward(x_odd, params, num_classes),
                        atol=1e-5, rtol=1e-5)

    # bf16 weights (v6e/v7x MXU fast path); elementwise math stays f32.
    params_bf16 = init_classifier_params(kp, input_size, hidden, num_classes,
                                         weight_dtype=jnp.bfloat16)
    out_bf16 = jax.block_until_ready(classifier_forward(x, params_bf16, num_classes))
    ref_bf16 = _reference_forward(x, params_bf16, num_classes)
    assert jnp.allclose(out_bf16, ref_bf16, atol=1e-2, rtol=1e-2)

    print("KERNEL_OK")
</pallas_src>

<mosaic_0001>
module attributes {stable_mosaic.version = 11 : i64} {
  func.func @_fused_mlp_kernel(%arg0: i32, %arg1: memref<8x32xf32, #tpu.memory_space<vmem>>, %arg2: memref<32x128xf32, #tpu.memory_space<vmem>>, %arg3: memref<1x128xf32, #tpu.memory_space<vmem>>, %arg4: memref<128x128xf32, #tpu.memory_space<vmem>>, %arg5: memref<1x128xf32, #tpu.memory_space<vmem>>, %arg6: memref<128x128xf32, #tpu.memory_space<vmem>>, %arg7: memref<1x128xf32, #tpu.memory_space<vmem>>, %arg8: memref<128x128xf32, #tpu.memory_space<vmem>>, %arg9: memref<1x128xf32, #tpu.memory_space<vmem>>, %arg10: memref<128x128xf32, #tpu.memory_space<vmem>>, %arg11: memref<1x128xf32, #tpu.memory_space<vmem>>, %arg12: memref<128x128xf32, #tpu.memory_space<vmem>>, %arg13: memref<1x128xf32, #tpu.memory_space<vmem>>, %arg14: memref<8x128xf32, #tpu.memory_space<vmem>>) attributes {dimension_semantics = [#tpu.dimension_semantics<parallel>], iteration_bounds = array<i64: 2>, scalar_prefetch = 0 : i64, scratch_operands = 0 : i64, tpu.core_type = #tpu.core_type<tc>, window_params = [{transform_indices = @transform_0, window_bounds = array<i64: 8, 32>}, {pipeline_mode = #tpu.pipeline_mode<synchronous>, transform_indices = @transform_1, window_bounds = array<i64: 32, 128>}, {pipeline_mode = #tpu.pipeline_mode<synchronous>, transform_indices = @transform_2, window_bounds = array<i64: 1, 128>}, {pipeline_mode = #tpu.pipeline_mode<synchronous>, transform_indices = @transform_3, window_bounds = array<i64: 128, 128>}, {pipeline_mode = #tpu.pipeline_mode<synchronous>, transform_indices = @transform_4, window_bounds = array<i64: 1, 128>}, {pipeline_mode = #tpu.pipeline_mode<synchronous>, transform_indices = @transform_5, window_bounds = array<i64: 128, 128>}, {pipeline_mode = #tpu.pipeline_mode<synchronous>, transform_indices = @transform_6, window_bounds = array<i64: 1, 128>}, {pipeline_mode = #tpu.pipeline_mode<synchronous>, transform_indices = @transform_7, window_bounds = array<i64: 128, 128>}, {pipeline_mode = #tpu.pipeline_mode<synchronous>, transform_indices = @transform_8, window_bounds = array<i64: 1, 128>}, {pipeline_mode = #tpu.pipeline_mode<synchronous>, transform_indices = @transform_9, window_bounds = array<i64: 128, 128>}, {pipeline_mode = #tpu.pipeline_mode<synchronous>, transform_indices = @transform_10, window_bounds = array<i64: 1, 128>}, {pipeline_mode = #tpu.pipeline_mode<synchronous>, transform_indices = @transform_11, window_bounds = array<i64: 128, 128>}, {pipeline_mode = #tpu.pipeline_mode<synchronous>, transform_indices = @transform_12, window_bounds = array<i64: 1, 128>}, {transform_indices = @transform_13, window_bounds = array<i64: 8, 128>}]} {
    %c0 = arith.constant 0 : index
    %c0_0 = arith.constant 0 : index
    %0 = vector.load %arg1[%c0, %c0_0] : memref<8x32xf32, #tpu.memory_space<vmem>>, vector<8x32xf32>
    %c0_1 = arith.constant 0 : index
    %c0_2 = arith.constant 0 : index
    %1 = vector.load %arg2[%c0_1, %c0_2] : memref<32x128xf32, #tpu.memory_space<vmem>>, vector<32x128xf32>
    %c0_3 = arith.constant 0 : index
    %c0_4 = arith.constant 0 : index
    %2 = vector.load %arg3[%c0_3, %c0_4] : memref<1x128xf32, #tpu.memory_space<vmem>>, vector<1x128xf32>
    %cst = arith.constant dense<0.000000e+00> : vector<8x128xf32>
    %3 = tpu.matmul %0, %1, %cst {dimension_numbers = #tpu.dot_dimension_numbers<[1], [0], [0], [1], [0, 0, 1, 1], [], []>} : vector<8x32xf32>, vector<32x128xf32>, vector<8x128xf32> -> vector<8x128xf32>
    %4 = vector.broadcast %2 : vector<1x128xf32> to vector<8x128xf32>
    %5 = arith.addf %3, %4 : vector<8x128xf32>
    %cst_5 = arith.constant 0.000000e+00 : f32
    %6 = vector.broadcast %cst_5 : f32 to vector<8x128xf32>
    %7 = arith.cmpf oge, %5, %6 : vector<8x128xf32>
    %cst_6 = arith.constant 0.00999999977 : f32
    %8 = vector.broadcast %cst_6 : f32 to vector<8x128xf32>
    %9 = arith.mulf %8, %5 : vector<8x128xf32>
    %10 = arith.select %7, %5, %9 : vector<8x128xi1>, vector<8x128xf32>
    %c0_7 = arith.constant 0 : index
    %c0_8 = arith.constant 0 : index
    %11 = vector.load %arg4[%c0_7, %c0_8] : memref<128x128xf32, #tpu.memory_space<vmem>>, vector<128x128xf32>
    %c0_9 = arith.constant 0 : index
    %c0_10 = arith.constant 0 : index
    %12 = vector.load %arg5[%c0_9, %c0_10] : memref<1x128xf32, #tpu.memory_space<vmem>>, vector<1x128xf32>
    %cst_11 = arith.constant dense<0.000000e+00> : vector<8x128xf32>
    %13 = tpu.matmul %10, %11, %cst_11 {dimension_numbers = #tpu.dot_dimension_numbers<[1], [0], [0], [1], [0, 0, 1, 1], [], []>} : vector<8x128xf32>, vector<128x128xf32>, vector<8x128xf32> -> vector<8x128xf32>
    %14 = vector.broadcast %12 : vector<1x128xf32> to vector<8x128xf32>
    %15 = arith.addf %13, %14 : vector<8x128xf32>
    %cst_12 = arith.constant 0.000000e+00 : f32
    %16 = vector.broadcast %cst_12 : f32 to vector<8x128xf32>
    %17 = arith.cmpf oge, %15, %16 : vector<8x128xf32>
    %cst_13 = arith.constant 0.00999999977 : f32
    %18 = vector.broadcast %cst_13 : f32 to vector<8x128xf32>
    %19 = arith.mulf %18, %15 : vector<8x128xf32>
    %20 = arith.select %17, %15, %19 : vector<8x128xi1>, vector<8x128xf32>
    %c0_14 = arith.constant 0 : index
    %c0_15 = arith.constant 0 : index
    %21 = vector.load %arg6[%c0_14, %c0_15] : memref<128x128xf32, #tpu.memory_space<vmem>>, vector<128x128xf32>
    %c0_16 = arith.constant 0 : index
    %c0_17 = arith.constant 0 : index
    %22 = vector.load %arg7[%c0_16, %c0_17] : memref<1x128xf32, #tpu.memory_space<vmem>>, vector<1x128xf32>
    %cst_18 = arith.constant dense<0.000000e+00> : vector<8x128xf32>
    %23 = tpu.matmul %20, %21, %cst_18 {dimension_numbers = #tpu.dot_dimension_numbers<[1], [0], [0], [1], [0, 0, 1, 1], [], []>} : vector<8x128xf32>, vector<128x128xf32>, vector<8x128xf32> -> vector<8x128xf32>
    %24 = vector.broadcast %22 : vector<1x128xf32> to vector<8x128xf32>
    %25 = arith.addf %23, %24 : vector<8x128xf32>
    %cst_19 = arith.constant 0.000000e+00 : f32
    %26 = vector.broadcast %cst_19 : f32 to vector<8x128xf32>
    %27 = arith.cmpf oge, %25, %26 : vector<8x128xf32>
    %cst_20 = arith.constant 0.00999999977 : f32
    %28 = vector.broadcast %cst_20 : f32 to vector<8x128xf32>
    %29 = arith.mulf %28, %25 : vector<8x128xf32>
    %30 = arith.select %27, %25, %29 : vector<8x128xi1>, vector<8x128xf32>
    %c0_21 = arith.constant 0 : index
    %c0_22 = arith.constant 0 : index
    %31 = vector.load %arg8[%c0_21, %c0_22] : memref<128x128xf32, #tpu.memory_space<vmem>>, vector<128x128xf32>
    %c0_23 = arith.constant 0 : index
    %c0_24 = arith.constant 0 : index
    %32 = vector.load %arg9[%c0_23, %c0_24] : memref<1x128xf32, #tpu.memory_space<vmem>>, vector<1x128xf32>
    %cst_25 = arith.constant dense<0.000000e+00> : vector<8x128xf32>
    %33 = tpu.matmul %30, %31, %cst_25 {dimension_numbers = #tpu.dot_dimension_numbers<[1], [0], [0], [1], [0, 0, 1, 1], [], []>} : vector<8x128xf32>, vector<128x128xf32>, vector<8x128xf32> -> vector<8x128xf32>
    %34 = vector.broadcast %32 : vector<1x128xf32> to vector<8x128xf32>
    %35 = arith.addf %33, %34 : vector<8x128xf32>
    %cst_26 = arith.constant 0.000000e+00 : f32
    %36 = vector.broadcast %cst_26 : f32 to vector<8x128xf32>
    %37 = arith.cmpf oge, %35, %36 : vector<8x128xf32>
    %cst_27 = arith.constant 0.00999999977 : f32
    %38 = vector.broadcast %cst_27 : f32 to vector<8x128xf32>
    %39 = arith.mulf %38, %35 : vector<8x128xf32>
    %40 = arith.select %37, %35, %39 : vector<8x128xi1>, vector<8x128xf32>
    %c0_28 = arith.constant 0 : index
    %c0_29 = arith.constant 0 : index
    %41 = vector.load %arg10[%c0_28, %c0_29] : memref<128x128xf32, #tpu.memory_space<vmem>>, vector<128x128xf32>
    %c0_30 = arith.constant 0 : index
    %c0_31 = arith.constant 0 : index
    %42 = vector.load %arg11[%c0_30, %c0_31] : memref<1x128xf32, #tpu.memory_space<vmem>>, vector<1x128xf32>
    %cst_32 = arith.constant dense<0.000000e+00> : vector<8x128xf32>
    %43 = tpu.matmul %40, %41, %cst_32 {dimension_numbers = #tpu.dot_dimension_numbers<[1], [0], [0], [1], [0, 0, 1, 1], [], []>} : vector<8x128xf32>, vector<128x128xf32>, vector<8x128xf32> -> vector<8x128xf32>
    %44 = vector.broadcast %42 : vector<1x128xf32> to vector<8x128xf32>
    %45 = arith.addf %43, %44 : vector<8x128xf32>
    %cst_33 = arith.constant 0.000000e+00 : f32
    %46 = vector.broadcast %cst_33 : f32 to vector<8x128xf32>
    %47 = arith.cmpf oge, %45, %46 : vector<8x128xf32>
    %cst_34 = arith.constant 0.00999999977 : f32
    %48 = vector.broadcast %cst_34 : f32 to vector<8x128xf32>
    %49 = arith.mulf %48, %45 : vector<8x128xf32>
    %50 = arith.select %47, %45, %49 : vector<8x128xi1>, vector<8x128xf32>
    %c0_35 = arith.constant 0 : index
    %c0_36 = arith.constant 0 : index
    %51 = vector.load %arg12[%c0_35, %c0_36] : memref<128x128xf32, #tpu.memory_space<vmem>>, vector<128x128xf32>
    %c0_37 = arith.constant 0 : index
    %c0_38 = arith.constant 0 : index
    %52 = vector.load %arg13[%c0_37, %c0_38] : memref<1x128xf32, #tpu.memory_space<vmem>>, vector<1x128xf32>
    %cst_39 = arith.constant dense<0.000000e+00> : vector<8x128xf32>
    %53 = tpu.matmul %50, %51, %cst_39 {dimension_numbers = #tpu.dot_dimension_numbers<[1], [0], [0], [1], [0, 0, 1, 1], [], []>} : vector<8x128xf32>, vector<128x128xf32>, vector<8x128xf32> -> vector<8x128xf32>
    %54 = vector.broadcast %52 : vector<1x128xf32> to vector<8x128xf32>
    %55 = arith.addf %53, %54 : vector<8x128xf32>
    %c0_40 = arith.constant 0 : index
    %c0_41 = arith.constant 0 : index
    %56 = vector.load %arg14[%c0_40, %c0_41] : memref<8x128xf32, #tpu.memory_space<vmem>>, vector<8x128xf32>
    tpu.vector_store %arg14[%c0_40, %c0_41], %55 {strides = array<i32>} : memref<8x128xf32, #tpu.memory_space<vmem>>, vector<8x128xf32>,
    return
  }
  func.func @transform_0(%arg0: i32) -> (i32, i32) {
    %c0_i32 = arith.constant 0 : i32
    %c0_i32_0 = arith.constant 0 : i32
    return %arg0, %c0_i32 : i32, i32
  }
  func.func @transform_1(%arg0: i32) -> (i32, i32) {
    %c0_i32 = arith.constant 0 : i32
    %c0_i32_0 = arith.constant 0 : i32
    %c0_i32_1 = arith.constant 0 : i32
    return %c0_i32, %c0_i32_0 : i32, i32
  }
  func.func @transform_2(%arg0: i32) -> (i32, i32) {
    %c0_i32 = arith.constant 0 : i32
    %c0_i32_0 = arith.constant 0 : i32
    %c0_i32_1 = arith.constant 0 : i32
    return %c0_i32, %c0_i32_0 : i32, i32
  }
  func.func @transform_3(%arg0: i32) -> (i32, i32) {
    %c0_i32 = arith.constant 0 : i32
    %c0_i32_0 = arith.constant 0 : i32
    %c0_i32_1 = arith.constant 0 : i32
    return %c0_i32, %c0_i32_0 : i32, i32
  }
  func.func @transform_4(%arg0: i32) -> (i32, i32) {
    %c0_i32 = arith.constant 0 : i32
    %c0_i32_0 = arith.constant 0 : i32
    %c0_i32_1 = arith.constant 0 : i32
    return %c0_i32, %c0_i32_0 : i32, i32
  }
  func.func @transform_5(%arg0: i32) -> (i32, i32) {
    %c0_i32 = arith.constant 0 : i32
    %c0_i32_0 = arith.constant 0 : i32
    %c0_i32_1 = arith.constant 0 : i32
    return %c0_i32, %c0_i32_0 : i32, i32
  }
  func.func @transform_6(%arg0: i32) -> (i32, i32) {
    %c0_i32 = arith.constant 0 : i32
    %c0_i32_0 = arith.constant 0 : i32
    %c0_i32_1 = arith.constant 0 : i32
    return %c0_i32, %c0_i32_0 : i32, i32
  }
  func.func @transform_7(%arg0: i32) -> (i32, i32) {
    %c0_i32 = arith.constant 0 : i32
    %c0_i32_0 = arith.constant 0 : i32
    %c0_i32_1 = arith.constant 0 : i32
    return %c0_i32, %c0_i32_0 : i32, i32
  }
  func.func @transform_8(%arg0: i32) -> (i32, i32) {
    %c0_i32 = arith.constant 0 : i32
    %c0_i32_0 = arith.constant 0 : i32
    %c0_i32_1 = arith.constant 0 : i32
    return %c0_i32, %c0_i32_0 : i32, i32
  }
  func.func @transform_9(%arg0: i32) -> (i32, i32) {
    %c0_i32 = arith.constant 0 : i32
    %c0_i32_0 = arith.constant 0 : i32
    %c0_i32_1 = arith.constant 0 : i32
    return %c0_i32, %c0_i32_0 : i32, i32
  }
  func.func @transform_10(%arg0: i32) -> (i32, i32) {
    %c0_i32 = arith.constant 0 : i32
    %c0_i32_0 = arith.constant 0 : i32
    %c0_i32_1 = arith.constant 0 : i32
    return %c0_i32, %c0_i32_0 : i32, i32
  }
  func.func @transform_11(%arg0: i32) -> (i32, i32) {
    %c0_i32 = arith.constant 0 : i32
    %c0_i32_0 = arith.constant 0 : i32
    %c0_i32_1 = arith.constant 0 : i32
    return %c0_i32, %c0_i32_0 : i32, i32
  }
  func.func @transform_12(%arg0: i32) -> (i32, i32) {
    %c0_i32 = arith.constant 0 : i32
    %c0_i32_0 = arith.constant 0 : i32
    %c0_i32_1 = arith.constant 0 : i32
    return %c0_i32, %c0_i32_0 : i32, i32
  }
  func.func @transform_13(%arg0: i32) -> (i32, i32) {
    %c0_i32 = arith.constant 0 : i32
    %c0_i32_0 = arith.constant 0 : i32
    return %arg0, %c0_i32 : i32, i32
  }
}

</mosaic_0001>

<llo_original>
// kernel: tpu_custom_call.1
$region0: #{tpu_custom_call.1}
  #allocation0 [shape = 'u32[]', space=smem, size = 0x4, offset = 0x4, fixed_abs, tag = 'smem constant byte address 0x4 - core index']
  #allocation1 [shape = 'u32[144,128]{1,0:T(1,128)}', space=vmem, size = 0x12000, scoped, tag = 'internal scratch']
  %s0 = inlined_call_operand.hbm [shape: f32[16,32], index: 0, kind: input, shape index: {}]
  %s1 = inlined_call_operand.hbm [shape: f32[32,128], index: 1, kind: input, shape index: {}]
  %s2 = inlined_call_operand.vmem [shape: f32[1,128], index: 2, kind: input, shape index: {}]
  %s3 = inlined_call_operand.hbm [shape: f32[128,128], index: 3, kind: input, shape index: {}]
  %s4 = inlined_call_operand.vmem [shape: f32[1,128], index: 4, kind: input, shape index: {}]
  %s5 = inlined_call_operand.hbm [shape: f32[128,128], index: 5, kind: input, shape index: {}]
  %s6 = inlined_call_operand.vmem [shape: f32[1,128], index: 6, kind: input, shape index: {}]
  %s7 = inlined_call_operand.hbm [shape: f32[128,128], index: 7, kind: input, shape index: {}]
  %s8 = inlined_call_operand.vmem [shape: f32[1,128], index: 8, kind: input, shape index: {}]
  %s9 = inlined_call_operand.hbm [shape: f32[128,128], index: 9, kind: input, shape index: {}]
  %s10 = inlined_call_operand.vmem [shape: f32[1,128], index: 10, kind: input, shape index: {}]
  %s11 = inlined_call_operand.hbm [shape: f32[128,128], index: 11, kind: input, shape index: {}]
  %s12 = inlined_call_operand.vmem [shape: f32[1,128], index: 12, kind: input, shape index: {}]
  %s13 = inlined_call_operand.hbm [shape: f32[16,128], index: 13, kind: output, shape index: {}]
  %s14 = sld [smem:[#allocation0]]
  $region113: #{tpu_custom_call.1} parent=0
    _
  %s16 = ssub.s32 1, %s14
  %s17 = scalar_select 0, %s16, %s14
  $region1: #{tpu_custom_call.1} parent=0
    #allocation2 [shape = 'u8[8192]{0}', space=vmem, size = 0x2000, scoped, tag = 'input window, operand 0']
    #allocation3 [shape = 's32[2]{0}', space=sflag, size = 0x8, scoped, tag = 'scoped memory for tpu_custom_call.1']
    #allocation4 [shape = 's32[2]{0}', space=sflag, size = 0x8, scoped, tag = 'scoped memory for tpu_custom_call.1']
    #allocation5 [shape = 'u8[16384]{0}', space=vmem, size = 0x4000, scoped, tag = 'input window, operand 1, single buffered']
    #allocation6 [shape = 's32[1]{0}', space=sflag, size = 0x4, scoped, tag = 'scoped memory for tpu_custom_call.1']
    #allocation7 [shape = 'u8[65536]{0}', space=vmem, size = 0x10000, scoped, tag = 'input window, operand 3, single buffered']
    #allocation8 [shape = 'u8[65536]{0}', space=vmem, size = 0x10000, scoped, tag = 'input window, operand 5, single buffered']
    #allocation9 [shape = 's32[1]{0}', space=sflag, size = 0x4, scoped, tag = 'scoped memory for tpu_custom_call.1']
    #allocation10 [shape = 'u8[65536]{0}', space=vmem, size = 0x10000, scoped, tag = 'input window, operand 7, single buffered']
    #allocation11 [shape = 'u8[65536]{0}', space=vmem, size = 0x10000, scoped, tag = 'input window, operand 9, single buffered']
    #allocation12 [shape = 's32[1]{0}', space=sflag, size = 0x4, scoped, tag = 'scoped memory for tpu_custom_call.1']
    #allocation13 [shape = 'u8[65536]{0}', space=vmem, size = 0x10000, scoped, tag = 'input window, operand 11, single buffered']
    #allocation14 [shape = 'u8[8192]{0}', space=vmem, size = 0x2000, scoped, tag = 'output window, operand 0']
    %18 = vsyncpa [#allocation3], 0
    %s19 = scalar_lea.sflag [#allocation3], 1
    %20 = vsyncpa %s19, 0
    %21 = vsyncpa [#allocation6], 0
    %22 = vsyncpa [#allocation9], 0
    %23 = vsyncpa [#allocation12], 0
    %24 = vsyncpa [#allocation4], 0
    %s25 = scalar_lea.sflag [#allocation4], 1
    %26 = vsyncpa %s25, 0
    loop: start=0, step=1, limit=4
    $region2: #{tpu_custom_call.1} parent=1 // loop_pre_header
      _
    $region3: #{tpu_custom_call.1} parent=1 // loop_header
      %s28 = sphi 0, %s32
      %p29 = scmp.ge.s32.totalorder %s28, 4
      %s38 = sphi 0, %s40
      %s41 = sphi 0, %s38
      %s42 = sphi 0, %s41
      %s58 = sphi 0, %s42
      %s62 = sphi 0, %s62
      %s64 = sphi 0, %s62
      %s65 = sphi 0, %s64
      %s79 = sphi 0, %s65
      %s83 = sphi 0, %s83
      %s85 = sphi 0, %s83
      %s86 = sphi 0, %s85
      %s100 = sphi 0, %s86
      %s104 = sphi 0, %s104
      %s106 = sphi 0, %s104
      %s107 = sphi 0, %s106
      %s121 = sphi 0, %s107
      %s125 = sphi 0, %s125
      %s127 = sphi 0, %s125
      %s128 = sphi 0, %s127
      %s142 = sphi 0, %s128
      %s146 = sphi 0, %s146
      %s148 = sphi 0, %s146
      %s149 = sphi 0, %s148
      %s163 = sphi 0, %s149
      %s167 = sphi 0, %s167
      %s169 = sphi 0, %s167
      %s170 = sphi 0, %s169
      %s184 = sphi 0, %s170
      %s188 = sphi 0, %s188
      %s190 = sphi 0, %s188
      %s191 = sphi 0, %s190
      %s205 = sphi 0, %s191
      %s209 = sphi 0, %s209
      %s211 = sphi 0, %s209
      %s212 = sphi 0, %s211
      %s226 = sphi 0, %s212
      %s230 = sphi 0, %s230
      %s232 = sphi 0, %s230
      %s233 = sphi 0, %s232
      %s247 = sphi 0, %s233
      %s251 = sphi 0, %s251
      %s253 = sphi 0, %s251
      %s254 = sphi 0, %s253
      %s268 = sphi 0, %s254
      %s272 = sphi 0, %s272
      %s274 = sphi 0, %s272
      %s275 = sphi 0, %s274
      %s289 = sphi 0, %s275
      %s293 = sphi 0, %s293
      %s295 = sphi 0, %s293
      %s296 = sphi 0, %s295
      %s310 = sphi 0, %s296
      %s316 = sphi 0, %s318
      %s319 = sphi 0, %s316
      %s320 = sphi 0, %s319
      %s336 = sphi 0, %s320
    $region4: #{tpu_custom_call.1} parent=1 // loop_header_branch
      %31 = sbr.rel (%p29) target = $region8
    $region5: #{tpu_custom_call.1} parent=1 // loop_body
      %s33 = ssub.s32 %s28, 1
      %s34 = ssub.s32 %s28, 2
      %s35 = sadd.s32 %s28, 1
      %s36 = ssub.s32 %s28, %s35
      %p37 = scmp.eq.s32.totalorder %s36, 0
      %s39 = sadd.s32 %s38, 1
      %s40 = scalar_select %p37, %s38, %s39
      %p43 = pneg %p37
      %p44 = scmp.eq.s32.totalorder %s28, 1
      %p45 = por %p43, %p44
      %p46 = scmp.ne.s32.totalorder %s38, %s41
      %p47 = scmp.eq.s32.totalorder %s28, 0
      %p48 = por %p46, %p47
      %p49 = scmp.ne.s32.totalorder %s38, %s41
      %p50 = scmp.eq.s32.totalorder %s33, 1
      %p51 = por %p49, %p50
      %p52 = scmp.ne.s32.totalorder %s41, %s42
      %p53 = scmp.eq.s32.totalorder %s33, 0
      %p54 = por %p52, %p53
      %p55 = scmp.ne.s32.totalorder %s41, %s42
      %p56 = scmp.eq.s32.totalorder %s34, 1
      %p57 = por %p55, %p56
      %p59 = scmp.ne.s32.totalorder %s42, %s58
      %p60 = scmp.eq.s32.totalorder %s34, 0
      %p61 = por %p59, %p60
      %s63 = sadd.s32 %s62, 1
      %p66 = scmp.eq.s32.totalorder %s28, 1
      %p67 = scmp.ne.s32.totalorder %s62, %s64
      %p68 = scmp.eq.s32.totalorder %s28, 0
      %p69 = por %p67, %p68
      %p70 = scmp.ne.s32.totalorder %s62, %s64
      %p71 = scmp.eq.s32.totalorder %s33, 1
      %p72 = por %p70, %p71
      %p73 = scmp.ne.s32.totalorder %s64, %s65
      %p74 = scmp.eq.s32.totalorder %s33, 0
      %p75 = por %p73, %p74
      %p76 = scmp.ne.s32.totalorder %s64, %s65
      %p77 = scmp.eq.s32.totalorder %s34, 1
      %p78 = por %p76, %p77
      %p80 = scmp.ne.s32.totalorder %s65, %s79
      %p81 = scmp.eq.s32.totalorder %s34, 0
      %p82 = por %p80, %p81
      %s84 = sadd.s32 %s83, 1
      %p87 = scmp.eq.s32.totalorder %s28, 1
      %p88 = scmp.ne.s32.totalorder %s83, %s85
      %p89 = scmp.eq.s32.totalorder %s28, 0
      %p90 = por %p88, %p89
      %p91 = scmp.ne.s32.totalorder %s83, %s85
      %p92 = scmp.eq.s32.totalorder %s33, 1
      %p93 = por %p91, %p92
      %p94 = scmp.ne.s32.totalorder %s85, %s86
      %p95 = scmp.eq.s32.totalorder %s33, 0
      %p96 = por %p94, %p95
      %p97 = scmp.ne.s32.totalorder %s85, %s86
      %p98 = scmp.eq.s32.totalorder %s34, 1
      %p99 = por %p97, %p98
      %p101 = scmp.ne.s32.totalorder %s86, %s100
      %p102 = scmp.eq.s32.totalorder %s34, 0
      %p103 = por %p101, %p102
      %s105 = sadd.s32 %s104, 1
      %p108 = scmp.eq.s32.totalorder %s28, 1
      %p109 = scmp.ne.s32.totalorder %s104, %s106
      %p110 = scmp.eq.s32.totalorder %s28, 0
      %p111 = por %p109, %p110
      %p112 = scmp.ne.s32.totalorder %s104, %s106
      %p113 = scmp.eq.s32.totalorder %s33, 1
      %p114 = por %p112, %p113
      %p115 = scmp.ne.s32.totalorder %s106, %s107
      %p116 = scmp.eq.s32.totalorder %s33, 0
      %p117 = por %p115, %p116
      %p118 = scmp.ne.s32.totalorder %s106, %s107
      %p119 = scmp.eq.s32.totalorder %s34, 1
      %p120 = por %p118, %p119
      %p122 = scmp.ne.s32.totalorder %s107, %s121
      %p123 = scmp.eq.s32.totalorder %s34, 0
      %p124 = por %p122, %p123
      %s126 = sadd.s32 %s125, 1
      %p129 = scmp.eq.s32.totalorder %s28, 1
      %p130 = scmp.ne.s32.totalorder %s125, %s127
      %p131 = scmp.eq.s32.totalorder %s28, 0
      %p132 = por %p130, %p131
      %p133 = scmp.ne.s32.totalorder %s125, %s127
      %p134 = scmp.eq.s32.totalorder %s33, 1
      %p135 = por %p133, %p134
      %p136 = scmp.ne.s32.totalorder %s127, %s128
      %p137 = scmp.eq.s32.totalorder %s33, 0
      %p138 = por %p136, %p137
      %p139 = scmp.ne.s32.totalorder %s127, %s128
      %p140 = scmp.eq.s32.totalorder %s34, 1
      %p141 = por %p139, %p140
      %p143 = scmp.ne.s32.totalorder %s128, %s142
      %p144 = scmp.eq.s32.totalorder %s34, 0
      %p145 = por %p143, %p144
      %s147 = sadd.s32 %s146, 1
      %p150 = scmp.eq.s32.totalorder %s28, 1
      %p151 = scmp.ne.s32.totalorder %s146, %s148
      %p152 = scmp.eq.s32.totalorder %s28, 0
      %p153 = por %p151, %p152
      %p154 = scmp.ne.s32.totalorder %s146, %s148
      %p155 = scmp.eq.s32.totalorder %s33, 1
      %p156 = por %p154, %p155
      %p157 = scmp.ne.s32.totalorder %s148, %s149
      %p158 = scmp.eq.s32.totalorder %s33, 0
      %p159 = por %p157, %p158
      %p160 = scmp.ne.s32.totalorder %s148, %s149
      %p161 = scmp.eq.s32.totalorder %s34, 1
      %p162 = por %p160, %p161
      %p164 = scmp.ne.s32.totalorder %s149, %s163
      %p165 = scmp.eq.s32.totalorder %s34, 0
      %p166 = por %p164, %p165
      %s168 = sadd.s32 %s167, 1
      %p171 = scmp.eq.s32.totalorder %s28, 1
      %p172 = scmp.ne.s32.totalorder %s167, %s169
      %p173 = scmp.eq.s32.totalorder %s28, 0
      %p174 = por %p172, %p173
      %p175 = scmp.ne.s32.totalorder %s167, %s169
      %p176 = scmp.eq.s32.totalorder %s33, 1
      %p177 = por %p175, %p176
      %p178 = scmp.ne.s32.totalorder %s169, %s170
      %p179 = scmp.eq.s32.totalorder %s33, 0
      %p180 = por %p178, %p179
      %p181 = scmp.ne.s32.totalorder %s169, %s170
      %p182 = scmp.eq.s32.totalorder %s34, 1
      %p183 = por %p181, %p182
      %p185 = scmp.ne.s32.totalorder %s170, %s184
      %p186 = scmp.eq.s32.totalorder %s34, 0
      %p187 = por %p185, %p186
      %s189 = sadd.s32 %s188, 1
      %p192 = scmp.eq.s32.totalorder %s28, 1
      %p193 = scmp.ne.s32.totalorder %s188, %s190
      %p194 = scmp.eq.s32.totalorder %s28, 0
      %p195 = por %p193, %p194
      %p196 = scmp.ne.s32.totalorder %s188, %s190
      %p197 = scmp.eq.s32.totalorder %s33, 1
      %p198 = por %p196, %p197
      %p199 = scmp.ne.s32.totalorder %s190, %s191
      %p200 = scmp.eq.s32.totalorder %s33, 0
      %p201 = por %p199, %p200
      %p202 = scmp.ne.s32.totalorder %s190, %s191
      %p203 = scmp.eq.s32.totalorder %s34, 1
      %p204 = por %p202, %p203
      %p206 = scmp.ne.s32.totalorder %s191, %s205
      %p207 = scmp.eq.s32.totalorder %s34, 0
      %p208 = por %p206, %p207
      %s210 = sadd.s32 %s209, 1
      %p213 = scmp.eq.s32.totalorder %s28, 1
      %p214 = scmp.ne.s32.totalorder %s209, %s211
      %p215 = scmp.eq.s32.totalorder %s28, 0
      %p216 = por %p214, %p215
      %p217 = scmp.ne.s32.totalorder %s209, %s211
      %p218 = scmp.eq.s32.totalorder %s33, 1
      %p219 = por %p217, %p218
      %p220 = scmp.ne.s32.totalorder %s211, %s212
      %p221 = scmp.eq.s32.totalorder %s33, 0
      %p222 = por %p220, %p221
      %p223 = scmp.ne.s32.totalorder %s211, %s212
      %p224 = scmp.eq.s32.totalorder %s34, 1
      %p225 = por %p223, %p224
      %p227 = scmp.ne.s32.totalorder %s212, %s226
      %p228 = scmp.eq.s32.totalorder %s34, 0
      %p229 = por %p227, %p228
      %s231 = sadd.s32 %s230, 1
      %p234 = scmp.eq.s32.totalorder %s28, 1
      %p235 = scmp.ne.s32.totalorder %s230, %s232
      %p236 = scmp.eq.s32.totalorder %s28, 0
      %p237 = por %p235, %p236
      %p238 = scmp.ne.s32.totalorder %s230, %s232
      %p239 = scmp.eq.s32.totalorder %s33, 1
      %p240 = por %p238, %p239
      %p241 = scmp.ne.s32.totalorder %s232, %s233
      %p242 = scmp.eq.s32.totalorder %s33, 0
      %p243 = por %p241, %p242
      %p244 = scmp.ne.s32.totalorder %s232, %s233
      %p245 = scmp.eq.s32.totalorder %s34, 1
      %p246 = por %p244, %p245
      %p248 = scmp.ne.s32.totalorder %s233, %s247
      %p249 = scmp.eq.s32.totalorder %s34, 0
      %p250 = por %p248, %p249
      %s252 = sadd.s32 %s251, 1
      %p255 = scmp.eq.s32.totalorder %s28, 1
      %p256 = scmp.ne.s32.totalorder %s251, %s253
      %p257 = scmp.eq.s32.totalorder %s28, 0
      %p258 = por %p256, %p257
      %p259 = scmp.ne.s32.totalorder %s251, %s253
      %p260 = scmp.eq.s32.totalorder %s33, 1
      %p261 = por %p259, %p260
      %p262 = scmp.ne.s32.totalorder %s253, %s254
      %p263 = scmp.eq.s32.totalorder %s33, 0
      %p264 = por %p262, %p263
      %p265 = scmp.ne.s32.totalorder %s253, %s254
      %p266 = scmp.eq.s32.totalorder %s34, 1
      %p267 = por %p265, %p266
      %p269 = scmp.ne.s32.totalorder %s254, %s268
      %p270 = scmp.eq.s32.totalorder %s34, 0
      %p271 = por %p269, %p270
      %s273 = sadd.s32 %s272, 1
      %p276 = scmp.eq.s32.totalorder %s28, 1
      %p277 = scmp.ne.s32.totalorder %s272, %s274
      %p278 = scmp.eq.s32.totalorder %s28, 0
      %p279 = por %p277, %p278
      %p280 = scmp.ne.s32.totalorder %s272, %s274
      %p281 = scmp.eq.s32.totalorder %s33, 1
      %p282 = por %p280, %p281
      %p283 = scmp.ne.s32.totalorder %s274, %s275
      %p284 = scmp.eq.s32.totalorder %s33, 0
      %p285 = por %p283, %p284
      %p286 = scmp.ne.s32.totalorder %s274, %s275
      %p287 = scmp.eq.s32.totalorder %s34, 1
      %p288 = por %p286, %p287
      %p290 = scmp.ne.s32.totalorder %s275, %s289
      %p291 = scmp.eq.s32.totalorder %s34, 0
      %p292 = por %p290, %p291
      %s294 = sadd.s32 %s293, 1
      %p297 = scmp.eq.s32.totalorder %s28, 1
      %p298 = scmp.ne.s32.totalorder %s293, %s295
      %p299 = scmp.eq.s32.totalorder %s28, 0
      %p300 = por %p298, %p299
      %p301 = scmp.ne.s32.totalorder %s293, %s295
      %p302 = scmp.eq.s32.totalorder %s33, 1
      %p303 = por %p301, %p302
      %p304 = scmp.ne.s32.totalorder %s295, %s296
      %p305 = scmp.eq.s32.totalorder %s33, 0
      %p306 = por %p304, %p305
      %p307 = scmp.ne.s32.totalorder %s295, %s296
      %p308 = scmp.eq.s32.totalorder %s34, 1
      %p309 = por %p307, %p308
      %p311 = scmp.ne.s32.totalorder %s296, %s310
      %p312 = scmp.eq.s32.totalorder %s34, 0
      %p313 = por %p311, %p312
      %s314 = ssub.s32 %s28, %s35
      %p315 = scmp.eq.s32.totalorder %s314, 0
      %s317 = sadd.s32 %s316, 1
      %s318 = scalar_select %p315, %s316, %s317
      %p321 = pneg %p315
      %p322 = scmp.eq.s32.totalorder %s28, 1
      %p323 = por %p321, %p322
      %p324 = scmp.ne.s32.totalorder %s316, %s319
      %p325 = scmp.eq.s32.totalorder %s28, 0
      %p326 = por %p324, %p325
      %p327 = scmp.ne.s32.totalorder %s316, %s319
      %p328 = scmp.eq.s32.totalorder %s33, 1
      %p329 = por %p327, %p328
      %p330 = scmp.ne.s32.totalorder %s319, %s320
      %p331 = scmp.eq.s32.totalorder %s33, 0
      %p332 = por %p330, %p331
      %p333 = scmp.ne.s32.totalorder %s319, %s320
      %p334 = scmp.eq.s32.totalorder %s34, 1
      %p335 = por %p333, %p334
      %p337 = scmp.ne.s32.totalorder %s320, %s336
      %p338 = scmp.eq.s32.totalorder %s34, 0
      %p339 = por %p337, %p338
      %p340 = scmp.le.s32.totalorder 1, %s28
      %p341 = scmp.lt.s32.totalorder %s28, 3
      %p342 = pnand %p340, %p341
      %p343 = pneg %p342
      // Predicated region
      $region9: #{tpu_custom_call.1} parent=5 // pred_check
        _
      $region10: #{tpu_custom_call.1} parent=5 // pred_check_branch
        %345 = sbr.rel (%p342) target = $region12
      $region11: #{tpu_custom_call.1} parent=5 // pred_region
        %s346 = ssub.s32 %s28, 1
        // Predicated region
        $region13: #{tpu_custom_call.1} parent=11 // pred_check
          %p347 = pneg %p75
        $region14: #{tpu_custom_call.1} parent=11 // pred_check_branch
          %349 = sbr.rel (%p347) target = $region16
        $region15: #{tpu_custom_call.1} parent=11 // pred_region
          %s351 = ssub.s32 512, 512
          %352 = vsyncadd [#allocation6], %s351
          %s353 = sshll.u32 [#allocation5], 4
          %s354 = int_to_ptr.vmem [resolvable:$true] %s353
          %359 = dma.hbm_to_vmem [thread:$0]  %s1, 512, %s354, [#allocation6], 128, 128, 8
        $region16: #{tpu_custom_call.1} parent=11 // pred_fallthru
          _
        // Predicated region
        $region17: #{tpu_custom_call.1} parent=11 // pred_check
          %p360 = pneg %p96
        $region18: #{tpu_custom_call.1} parent=11 // pred_check_branch
          %362 = sbr.rel (%p360) target = $region20
        $region19: #{tpu_custom_call.1} parent=11 // pred_region
          _
        $region20: #{tpu_custom_call.1} parent=11 // pred_fallthru
          _
        // Predicated region
        $region21: #{tpu_custom_call.1} parent=11 // pred_check
          %p363 = pneg %p117
        $region22: #{tpu_custom_call.1} parent=11 // pred_check_branch
          %365 = sbr.rel (%p363) target = $region24
        $region23: #{tpu_custom_call.1} parent=11 // pred_region
          %s367 = ssub.s32 2048, 2048
          %368 = vsyncadd [#allocation6], %s367
          %s369 = sshll.u32 [#allocation7], 4
          %s370 = int_to_ptr.vmem [resolvable:$true] %s369
          %375 = dma.hbm_to_vmem [thread:$0]  %s3, 2048, %s370, [#allocation6], 128, 128, 8
        $region24: #{tpu_custom_call.1} parent=11 // pred_fallthru
          _
        // Predicated region
        $region25: #{tpu_custom_call.1} parent=11 // pred_check
          %p376 = pneg %p138
        $region26: #{tpu_custom_call.1} parent=11 // pred_check_branch
          %378 = sbr.rel (%p376) target = $region28
        $region27: #{tpu_custom_call.1} parent=11 // pred_region
          _
        $region28: #{tpu_custom_call.1} parent=11 // pred_fallthru
          _
        // Predicated region
        $region29: #{tpu_custom_call.1} parent=11 // pred_check
          %p379 = pneg %p159
        $region30: #{tpu_custom_call.1} parent=11 // pred_check_branch
          %381 = sbr.rel (%p379) target = $region32
        $region31: #{tpu_custom_call.1} parent=11 // pred_region
          %s383 = ssub.s32 2048, 2048
          %384 = vsyncadd [#allocation9], %s383
          %s385 = sshll.u32 [#allocation8], 4
          %s386 = int_to_ptr.vmem [resolvable:$true] %s385
          %391 = dma.hbm_to_vmem [thread:$0]  %s5, 2048, %s386, [#allocation9], 128, 128, 8
        $region32: #{tpu_custom_call.1} parent=11 // pred_fallthru
          _
        // Predicated region
        $region33: #{tpu_custom_call.1} parent=11 // pred_check
          %p392 = pneg %p180
        $region34: #{tpu_custom_call.1} parent=11 // pred_check_branch
          %394 = sbr.rel (%p392) target = $region36
        $region35: #{tpu_custom_call.1} parent=11 // pred_region
          _
        $region36: #{tpu_custom_call.1} parent=11 // pred_fallthru
          _
        // Predicated region
        $region37: #{tpu_custom_call.1} parent=11 // pred_check
          %p395 = pneg %p201
        $region38: #{tpu_custom_call.1} parent=11 // pred_check_branch
          %397 = sbr.rel (%p395) target = $region40
        $region39: #{tpu_custom_call.1} parent=11 // pred_region
          %s399 = ssub.s32 2048, 2048
          %400 = vsyncadd [#allocation9], %s399
          %s401 = sshll.u32 [#allocation10], 4
          %s402 = int_to_ptr.vmem [resolvable:$true] %s401
          %407 = dma.hbm_to_vmem [thread:$0]  %s7, 2048, %s402, [#allocation9], 128, 128, 8
        $region40: #{tpu_custom_call.1} parent=11 // pred_fallthru
          _
        // Predicated region
        $region41: #{tpu_custom_call.1} parent=11 // pred_check
          %p408 = pneg %p222
        $region42: #{tpu_custom_call.1} parent=11 // pred_check_branch
          %410 = sbr.rel (%p408) target = $region44
        $region43: #{tpu_custom_call.1} parent=11 // pred_region
          _
        $region44: #{tpu_custom_call.1} parent=11 // pred_fallthru
          _
        // Predicated region
        $region45: #{tpu_custom_call.1} parent=11 // pred_check
          %p411 = pneg %p243
        $region46: #{tpu_custom_call.1} parent=11 // pred_check_branch
          %413 = sbr.rel (%p411) target = $region48
        $region47: #{tpu_custom_call.1} parent=11 // pred_region
          %s415 = ssub.s32 2048, 2048
          %416 = vsyncadd [#allocation12], %s415
          %s417 = sshll.u32 [#allocation11], 4
          %s418 = int_to_ptr.vmem [resolvable:$true] %s417
          %423 = dma.hbm_to_vmem [thread:$0]  %s9, 2048, %s418, [#allocation12], 128, 128, 8
        $region48: #{tpu_custom_call.1} parent=11 // pred_fallthru
          _
        // Predicated region
        $region49: #{tpu_custom_call.1} parent=11 // pred_check
          %p424 = pneg %p264
        $region50: #{tpu_custom_call.1} parent=11 // pred_check_branch
          %426 = sbr.rel (%p424) target = $region52
        $region51: #{tpu_custom_call.1} parent=11 // pred_region
          _
        $region52: #{tpu_custom_call.1} parent=11 // pred_fallthru
          _
        // Predicated region
        $region53: #{tpu_custom_call.1} parent=11 // pred_check
          %p427 = pneg %p285
        $region54: #{tpu_custom_call.1} parent=11 // pred_check_branch
          %429 = sbr.rel (%p427) target = $region56
        $region55: #{tpu_custom_call.1} parent=11 // pred_region
          %s431 = ssub.s32 2048, 2048
          %432 = vsyncadd [#allocation12], %s431
          %s433 = sshll.u32 [#allocation13], 4
          %s434 = int_to_ptr.vmem [resolvable:$true] %s433
          %439 = dma.hbm_to_vmem [thread:$0]  %s11, 2048, %s434, [#allocation12], 128, 128, 8
        $region56: #{tpu_custom_call.1} parent=11 // pred_fallthru
          _
        // Predicated region
        $region57: #{tpu_custom_call.1} parent=11 // pred_check
          %p440 = pneg %p306
        $region58: #{tpu_custom_call.1} parent=11 // pred_check_branch
          %442 = sbr.rel (%p440) target = $region60
        $region59: #{tpu_custom_call.1} parent=11 // pred_region
          _
        $region60: #{tpu_custom_call.1} parent=11 // pred_fallthru
          _
      $region12: #{tpu_custom_call.1} parent=5 // pred_fallthru
        _
      %p443 = scmp.lt.s32.totalorder %s28, 2
      // Predicated region
      $region61: #{tpu_custom_call.1} parent=5 // pred_check
        %p444 = pneg %p443
      $region62: #{tpu_custom_call.1} parent=5 // pred_check_branch
        %446 = sbr.rel (%p444) target = $region64
      $region63: #{tpu_custom_call.1} parent=5 // pred_region
        // Predicated region
        $region65: #{tpu_custom_call.1} parent=63 // pred_check
          %p447 = pneg %p48
        $region66: #{tpu_custom_call.1} parent=63 // pred_check_branch
          %449 = sbr.rel (%p447) target = $region68
        $region67: #{tpu_custom_call.1} parent=63 // pred_region
          %s450 = sand.u32 %s38, 1
          %s451 = scalar_lea.sflag [#allocation3], %s450
          %s452 = sand.u32 %s38, 1
          %s453 = smul.addr %s452, 8
          %s454 = scalar_lea.vmem [#allocation2], %s453
          %s456 = ssub.s32 128, 128
          %457 = vsyncadd %s451, %s456
          %s458 = smul.addr %s28, 128
          %s459 = scalar_lea.hbm %s0, %s458
          %s461 = sshll.u32 %s454, 4
          %s462 = int_to_ptr.vmem [resolvable:$true] %s461
          %464 = dma.hbm_to_vmem [thread:$0]  %s459, 128, %s462, %s451
        $region68: #{tpu_custom_call.1} parent=63 // pred_fallthru
          _
      $region64: #{tpu_custom_call.1} parent=5 // pred_fallthru
        _
      %p465 = scmp.le.s32.totalorder 1, %s28
      %p466 = scmp.lt.s32.totalorder %s28, 3
      %p467 = pnand %p465, %p466
      %p468 = pneg %p467
      // Predicated region
      $region69: #{tpu_custom_call.1} parent=5 // pred_check
        _
      $region70: #{tpu_custom_call.1} parent=5 // pred_check_branch
        %470 = sbr.rel (%p467) target = $region72
      $region71: #{tpu_custom_call.1} parent=5 // pred_region
        %s471 = ssub.s32 %s28, 1
        %s472 = sand.u32 %s41, 1
        %s473 = scalar_lea.sflag [#allocation3], %s472
        %s474 = sand.u32 %s41, 1
        %s475 = smul.addr %s474, 8
        %s476 = scalar_lea.vmem [#allocation2], %s475
        // Predicated region
        $region73: #{tpu_custom_call.1} parent=71 // pred_check
          %p477 = pneg %p54
        $region74: #{tpu_custom_call.1} parent=71 // pred_check_branch
          %479 = sbr.rel (%p477) target = $region76
        $region75: #{tpu_custom_call.1} parent=71 // pred_region
          %480 = dma.done %s473, 128
        $region76: #{tpu_custom_call.1} parent=71 // pred_fallthru
          _
        // Predicated region
        $region77: #{tpu_custom_call.1} parent=71 // pred_check
          %p481 = pneg %p75
        $region78: #{tpu_custom_call.1} parent=71 // pred_check_branch
          %483 = sbr.rel (%p481) target = $region80
        $region79: #{tpu_custom_call.1} parent=71 // pred_region
          %484 = dma.done [#allocation6], 512
        $region80: #{tpu_custom_call.1} parent=71 // pred_fallthru
          _
        // Predicated region
        $region81: #{tpu_custom_call.1} parent=71 // pred_check
          %p485 = pneg %p117
        $region82: #{tpu_custom_call.1} parent=71 // pred_check_branch
          %487 = sbr.rel (%p485) target = $region84
        $region83: #{tpu_custom_call.1} parent=71 // pred_region
          %488 = dma.done [#allocation6], 2048
        $region84: #{tpu_custom_call.1} parent=71 // pred_fallthru
          _
        // Predicated region
        $region85: #{tpu_custom_call.1} parent=71 // pred_check
          %p489 = pneg %p159
        $region86: #{tpu_custom_call.1} parent=71 // pred_check_branch
          %491 = sbr.rel (%p489) target = $region88
        $region87: #{tpu_custom_call.1} parent=71 // pred_region
          %492 = dma.done [#allocation9], 2048
        $region88: #{tpu_custom_call.1} parent=71 // pred_fallthru
          _
        // Predicated region
        $region89: #{tpu_custom_call.1} parent=71 // pred_check
          %p493 = pneg %p201
        $region90: #{tpu_custom_call.1} parent=71 // pred_check_branch
          %495 = sbr.rel (%p493) target = $region92
        $region91: #{tpu_custom_call.1} parent=71 // pred_region
          %496 = dma.done [#allocation9], 2048
        $region92: #{tpu_custom_call.1} parent=71 // pred_fallthru
          _
        // Predicated region
        $region93: #{tpu_custom_call.1} parent=71 // pred_check
          %p497 = pneg %p243
        $region94: #{tpu_custom_call.1} parent=71 // pred_check_branch
          %499 = sbr.rel (%p497) target = $region96
        $region95: #{tpu_custom_call.1} parent=71 // pred_region
          %500 = dma.done [#allocation12], 2048
        $region96: #{tpu_custom_call.1} parent=71 // pred_fallthru
          _
        // Predicated region
        $region97: #{tpu_custom_call.1} parent=71 // pred_check
          %p501 = pneg %p285
        $region98: #{tpu_custom_call.1} parent=71 // pred_check_branch
          %503 = sbr.rel (%p501) target = $region100
        $region99: #{tpu_custom_call.1} parent=71 // pred_region
          %504 = dma.done [#allocation12], 2048
        $region100: #{tpu_custom_call.1} parent=71 // pred_fallthru
          _
        %s505 = sand.u32 %s41, 1
        %s506 = scalar_lea.sflag [#allocation3], %s505
        %s507 = sand.u32 %s41, 1
        %s508 = smul.addr %s507, 8
        %s509 = scalar_lea.vmem [#allocation2], %s508
        %p510 = pneg %p54
        %p511 = pneg %p51
        %p512 = pneg %p75
        %p513 = pneg %p72
        %p514 = pneg %p96
        %p515 = pneg %p93
        %p516 = pneg %p117
        %p517 = pneg %p114
        %p518 = pneg %p138
        %p519 = pneg %p135
        %p520 = pneg %p159
        %p521 = pneg %p156
        %p522 = pneg %p180
        %p523 = pneg %p177
        %p524 = pneg %p201
        %p525 = pneg %p198
        %p526 = pneg %p222
        %p527 = pneg %p219
        %p528 = pneg %p243
        %p529 = pneg %p240
        %p530 = pneg %p264
        %p531 = pneg %p261
        %p532 = pneg %p285
        %p533 = pneg %p282
        %p534 = pneg %p306
        %p535 = pneg %p303
        %p536 = pneg %p332
        %p537 = pneg %p329
        %s538 = sand.u32 %s319, 1
        %s539 = scalar_lea.sflag [#allocation4], %s538
        %s540 = sand.u32 %s319, 1
        %s541 = smul.addr %s540, 8
        %s542 = scalar_lea.vmem [#allocation14], %s541
        %v543 = vld [vmem:[%s476] sm:$0xff]
        %v544 = vld [vmem:[#allocation5] sm:$0xff]
        %v545 = vld [vmem:[#allocation5 + $0x8] sm:$0xff]
        %v546 = vld [vmem:[#allocation5 + $0x10] sm:$0xff]
        %v547 = vld [vmem:[#allocation5 + $0x18] sm:$0xff]
        %v548 = vld [vmem:[%s2] sm:$0x1]
        %v550 = vlaneseq
        %v551 = vshrl.u32 %v550, 7
        %v552 = vsub.s32 0, %v551
        %v553 = vrot.slane %v548, %v552
        %vm555 = vcmask 261120
        %v557 = vsel %vm555, %v543, 0
        %559 = vmatprep.subr.mxu0 0.0
        %560 = vmatpush1.msra.mxu0 %v544
        %561 = vmatprep.subr.mxu0 0.0
        %562 = vmatpush1.msra.mxu0 %v545
        %563 = vmatprep.subr.mxu0 0.0
        %564 = vmatpush1.msra.mxu0 %v546
        %565 = vmatprep.subr.mxu0 0.0
        %566 = vmatpush1.msra.mxu0 %v547
        %567 = vmatprep.subr.mxu0 0.0
        %568 = vmatpush1.msra.mxu0 0.0
        %569 = vmatprep.subr.mxu0 0.0
        %570 = vmatpush1.msra.mxu0 0.0
        %571 = vmatprep.subr.mxu0 0.0
        %572 = vmatpush1.msra.mxu0 0.0
        %573 = vmatprep.subr.mxu0 0.0
        %574 = vmatpush1.msra.mxu0 0.0
        %575 = vmatprep.subr.mxu0 0.0
        %576 = vmatpush1.msra.mxu0 0.0
        %577 = vmatprep.subr.mxu0 0.0
        %578 = vmatpush1.msra.mxu0 0.0
        %579 = vmatprep.subr.mxu0 0.0
        %580 = vmatpush1.msra.mxu0 0.0
        %581 = vmatprep.subr.mxu0 0.0
        %582 = vmatpush1.msra.mxu0 0.0
        %583 = vmatprep.subr.mxu0 0.0
        %584 = vmatpush1.msra.mxu0 0.0
        %585 = vmatprep.subr.mxu0 0.0
        %586 = vmatpush1.msra.mxu0 0.0
        %587 = vmatprep.subr.mxu0 0.0
        %588 = vmatpush1.msra.mxu0 0.0
        %589 = vmatprep.subr.mxu0 0.0
        %590 = vmatpush1.msra.mxu0 0.0
        %591 = vmatprep.subr.mxu0 0.0
        %592 = vmatpush1.msra.mxu0 0.0
        %593 = vmatprep.subr.mxu0 0.0
        %594 = vmatpush1.msra.mxu0 0.0
        %595 = vmatprep.subr.mxu0 0.0
        %596 = vmatpush1.msra.mxu0 0.0
        %597 = vmatprep.subr.mxu0 0.0
        %598 = vmatpush1.msra.mxu0 0.0
        %599 = vmatprep.subr.mxu0 0.0
        %600 = vmatpush1.msra.mxu0 0.0
        %601 = vmatprep.subr.mxu0 0.0
        %602 = vmatpush1.msra.mxu0 0.0
        %603 = vmatprep.subr.mxu0 0.0
        %604 = vmatpush1.msra.mxu0 0.0
        %605 = vmatprep.subr.mxu0 0.0
        %606 = vmatpush1.msra.mxu0 0.0
        %607 = vmatprep.subr.mxu0 0.0
        %608 = vmatpush1.msra.mxu0 0.0
        %609 = vmatprep.subr.mxu0 0.0
        %610 = vmatpush1.msra.mxu0 0.0
        %611 = vmatprep.subr.mxu0 0.0
        %612 = vmatpush1.msra.mxu0 0.0
        %613 = vmatprep.subr.mxu0 0.0
        %614 = vmatpush1.msra.mxu0 0.0
        %615 = vmatprep.subr.mxu0 0.0
        %616 = vmatpush1.msra.mxu0 0.0
        %617 = vmatprep.subr.mxu0 0.0
        %618 = vmatpush1.msra.mxu0 0.0
        %619 = vmatprep.subr.mxu0 0.0
        %620 = vmatpush1.msra.mxu0 0.0
        %621 = vmatprep.subr.mxu0 0.0
        %622 = vmatpush1.msra.mxu0 0.0
        %623 = vmatprep.mubr.f32.mxu0 0.0
        %624 = vmatmul.mubr.f32.gmra.mrb[0].mxu0 %v557
        %v625 = vpop.f32.mrb[0].mxu0
        %v626 = vadd.f32 %v553, %v625
        %v627 = vpop.f32.mrb[0].mxu0
        %628 = vdwg.mxu0
        %vm629 = vcmp.ge.f32.partialorder %v626, 0.0
        %v630 = vmul.f32 %v626, 0.01
        %v631 = vsel %vm629, %v626, %v630
        %v632 = vld [vmem:[#allocation7] sm:$0xff]
        %v633 = vld [vmem:[#allocation7 + $0x8] sm:$0xff]
        %v634 = vld [vmem:[#allocation7 + $0x10] sm:$0xff]
        %v635 = vld [vmem:[#allocation7 + $0x18] sm:$0xff]
        %v636 = vld [vmem:[#allocation7 + $0x20] sm:$0xff]
        %v637 = vld [vmem:[#allocation7 + $0x28] sm:$0xff]
        %v638 = vld [vmem:[#allocation7 + $0x30] sm:$0xff]
        %v639 = vld [vmem:[#allocation7 + $0x38] sm:$0xff]
        %v640 = vld [vmem:[#allocation7 + $0x40] sm:$0xff]
        %v641 = vld [vmem:[#allocation7 + $0x48] sm:$0xff]
        %v642 = vld [vmem:[#allocation7 + $0x50] sm:$0xff]
        %v643 = vld [vmem:[#allocation7 + $0x58] sm:$0xff]
        %v644 = vld [vmem:[#allocation7 + $0x60] sm:$0xff]
        %v645 = vld [vmem:[#allocation7 + $0x68] sm:$0xff]
        %v646 = vld [vmem:[#allocation7 + $0x70] sm:$0xff]
        %v647 = vld [vmem:[#allocation7 + $0x78] sm:$0xff]
        %v648 = vld [vmem:[%s4] sm:$0x1]
        %v650 = vlaneseq
        %v651 = vshrl.u32 %v650, 7
        %v652 = vsub.s32 0, %v651
        %v653 = vrot.slane %v648, %v652
        %655 = vmatprep.subr.mxu0 0.0
        %656 = vmatpush1.msra.mxu0 %v632
        %657 = vmatprep.subr.mxu0 0.0
        %658 = vmatpush1.msra.mxu0 %v633
        %659 = vmatprep.subr.mxu0 0.0
        %660 = vmatpush1.msra.mxu0 %v634
        %661 = vmatprep.subr.mxu0 0.0
        %662 = vmatpush1.msra.mxu0 %v635
        %663 = vmatprep.subr.mxu0 0.0
        %664 = vmatpush1.msra.mxu0 %v636
        %665 = vmatprep.subr.mxu0 0.0
        %666 = vmatpush1.msra.mxu0 %v637
        %667 = vmatprep.subr.mxu0 0.0
        %668 = vmatpush1.msra.mxu0 %v638
        %669 = vmatprep.subr.mxu0 0.0
        %670 = vmatpush1.msra.mxu0 %v639
        %671 = vmatprep.subr.mxu0 0.0
        %672 = vmatpush1.msra.mxu0 %v640
        %673 = vmatprep.subr.mxu0 0.0
        %674 = vmatpush1.msra.mxu0 %v641
        %675 = vmatprep.subr.mxu0 0.0
        %676 = vmatpush1.msra.mxu0 %v642
        %677 = vmatprep.subr.mxu0 0.0
        %678 = vmatpush1.msra.mxu0 %v643
        %679 = vmatprep.subr.mxu0 0.0
        %680 = vmatpush1.msra.mxu0 %v644
        %681 = vmatprep.subr.mxu0 0.0
        %682 = vmatpush1.msra.mxu0 %v645
        %683 = vmatprep.subr.mxu0 0.0
        %684 = vmatpush1.msra.mxu0 %v646
        %685 = vmatprep.subr.mxu0 0.0
        %686 = vmatpush1.msra.mxu0 %v647
        %687 = vmatprep.subr.mxu0 0.0
        %688 = vmatpush1.msra.mxu0 0.0
        %689 = vmatprep.subr.mxu0 0.0
        %690 = vmatpush1.msra.mxu0 0.0
        %691 = vmatprep.subr.mxu0 0.0
        %692 = vmatpush1.msra.mxu0 0.0
        %693 = vmatprep.subr.mxu0 0.0
        %694 = vmatpush1.msra.mxu0 0.0
        %695 = vmatprep.subr.mxu0 0.0
        %696 = vmatpush1.msra.mxu0 0.0
        %697 = vmatprep.subr.mxu0 0.0
        %698 = vmatpush1.msra.mxu0 0.0
        %699 = vmatprep.subr.mxu0 0.0
        %700 = vmatpush1.msra.mxu0 0.0
        %701 = vmatprep.subr.mxu0 0.0
        %702 = vmatpush1.msra.mxu0 0.0
        %703 = vmatprep.subr.mxu0 0.0
        %704 = vmatpush1.msra.mxu0 0.0
        %705 = vmatprep.subr.mxu0 0.0
        %706 = vmatpush1.msra.mxu0 0.0
        %707 = vmatprep.subr.mxu0 0.0
        %708 = vmatpush1.msra.mxu0 0.0
        %709 = vmatprep.subr.mxu0 0.0
        %710 = vmatpush1.msra.mxu0 0.0
        %711 = vmatprep.subr.mxu0 0.0
        %712 = vmatpush1.msra.mxu0 0.0
        %713 = vmatprep.subr.mxu0 0.0
        %714 = vmatpush1.msra.mxu0 0.0
        %715 = vmatprep.subr.mxu0 0.0
        %716 = vmatpush1.msra.mxu0 0.0
        %717 = vmatprep.subr.mxu0 0.0
        %718 = vmatpush1.msra.mxu0 0.0
        %719 = vmatprep.mubr.f32.mxu0 0.0
        %720 = vmatmul.mubr.f32.gmra.mrb[0].mxu0 %v631
        %v721 = vpop.f32.mrb[0].mxu0
        %v722 = vadd.f32 %v653, %v721
        %v723 = vpop.f32.mrb[0].mxu0
        %724 = vdwg.mxu0
        %vm725 = vcmp.ge.f32.partialorder %v722, 0.0
        %v726 = vmul.f32 %v722, 0.01
        %v727 = vsel %vm725, %v722, %v726
        %v728 = vld [vmem:[#allocation8] sm:$0xff]
        %v729 = vld [vmem:[#allocation8 + $0x8] sm:$0xff]
        %v730 = vld [vmem:[#allocation8 + $0x10] sm:$0xff]
        %v731 = vld [vmem:[#allocation8 + $0x18] sm:$0xff]
        %v732 = vld [vmem:[#allocation8 + $0x20] sm:$0xff]
        %v733 = vld [vmem:[#allocation8 + $0x28] sm:$0xff]
        %v734 = vld [vmem:[#allocation8 + $0x30] sm:$0xff]
        %v735 = vld [vmem:[#allocation8 + $0x38] sm:$0xff]
        %v736 = vld [vmem:[#allocation8 + $0x40] sm:$0xff]
        %v737 = vld [vmem:[#allocation8 + $0x48] sm:$0xff]
        %v738 = vld [vmem:[#allocation8 + $0x50] sm:$0xff]
        %v739 = vld [vmem:[#allocation8 + $0x58] sm:$0xff]
        %v740 = vld [vmem:[#allocation8 + $0x60] sm:$0xff]
        %v741 = vld [vmem:[#allocation8 + $0x68] sm:$0xff]
        %v742 = vld [vmem:[#allocation8 + $0x70] sm:$0xff]
        %v743 = vld [vmem:[#allocation8 + $0x78] sm:$0xff]
        %v744 = vld [vmem:[%s6] sm:$0x1]
        %v746 = vlaneseq
        %v747 = vshrl.u32 %v746, 7
        %v748 = vsub.s32 0, %v747
        %v749 = vrot.slane %v744, %v748
        %751 = vmatprep.subr.mxu0 0.0
        %752 = vmatpush1.msra.mxu0 %v728
        %753 = vmatprep.subr.mxu0 0.0
        %754 = vmatpush1.msra.mxu0 %v729
        %755 = vmatprep.subr.mxu0 0.0
        %756 = vmatpush1.msra.mxu0 %v730
        %757 = vmatprep.subr.mxu0 0.0
        %758 = vmatpush1.msra.mxu0 %v731
        %759 = vmatprep.subr.mxu0 0.0
        %760 = vmatpush1.msra.mxu0 %v732
        %761 = vmatprep.subr.mxu0 0.0
        %762 = vmatpush1.msra.mxu0 %v733
        %763 = vmatprep.subr.mxu0 0.0
        %764 = vmatpush1.msra.mxu0 %v734
        %765 = vmatprep.subr.mxu0 0.0
        %766 = vmatpush1.msra.mxu0 %v735
        %767 = vmatprep.subr.mxu0 0.0
        %768 = vmatpush1.msra.mxu0 %v736
        %769 = vmatprep.subr.mxu0 0.0
        %770 = vmatpush1.msra.mxu0 %v737
        %771 = vmatprep.subr.mxu0 0.0
        %772 = vmatpush1.msra.mxu0 %v738
        %773 = vmatprep.subr.mxu0 0.0
        %774 = vmatpush1.msra.mxu0 %v739
        %775 = vmatprep.subr.mxu0 0.0
        %776 = vmatpush1.msra.mxu0 %v740
        %777 = vmatprep.subr.mxu0 0.0
        %778 = vmatpush1.msra.mxu0 %v741
        %779 = vmatprep.subr.mxu0 0.0
        %780 = vmatpush1.msra.mxu0 %v742
        %781 = vmatprep.subr.mxu0 0.0
        %782 = vmatpush1.msra.mxu0 %v743
        %783 = vmatprep.subr.mxu0 0.0
        %784 = vmatpush1.msra.mxu0 0.0
        %785 = vmatprep.subr.mxu0 0.0
        %786 = vmatpush1.msra.mxu0 0.0
        %787 = vmatprep.subr.mxu0 0.0
        %788 = vmatpush1.msra.mxu0 0.0
        %789 = vmatprep.subr.mxu0 0.0
        %790 = vmatpush1.msra.mxu0 0.0
        %791 = vmatprep.subr.mxu0 0.0
        %792 = vmatpush1.msra.mxu0 0.0
        %793 = vmatprep.subr.mxu0 0.0
        %794 = vmatpush1.msra.mxu0 0.0
        %795 = vmatprep.subr.mxu0 0.0
        %796 = vmatpush1.msra.mxu0 0.0
        %797 = vmatprep.subr.mxu0 0.0
        %798 = vmatpush1.msra.mxu0 0.0
        %799 = vmatprep.subr.mxu0 0.0
        %800 = vmatpush1.msra.mxu0 0.0
        %801 = vmatprep.subr.mxu0 0.0
        %802 = vmatpush1.msra.mxu0 0.0
        %803 = vmatprep.subr.mxu0 0.0
        %804 = vmatpush1.msra.mxu0 0.0
        %805 = vmatprep.subr.mxu0 0.0
        %806 = vmatpush1.msra.mxu0 0.0
        %807 = vmatprep.subr.mxu0 0.0
        %808 = vmatpush1.msra.mxu0 0.0
        %809 = vmatprep.subr.mxu0 0.0
        %810 = vmatpush1.msra.mxu0 0.0
        %811 = vmatprep.subr.mxu0 0.0
        %812 = vmatpush1.msra.mxu0 0.0
        %813 = vmatprep.subr.mxu0 0.0
        %814 = vmatpush1.msra.mxu0 0.0
        %815 = vmatprep.mubr.f32.mxu0 0.0
        %816 = vmatmul.mubr.f32.gmra.mrb[0].mxu0 %v727
        %v817 = vpop.f32.mrb[0].mxu0
        %v818 = vadd.f32 %v749, %v817
        %v819 = vpop.f32.mrb[0].mxu0
        %820 = vdwg.mxu0
        %vm821 = vcmp.ge.f32.partialorder %v818, 0.0
        %v822 = vmul.f32 %v818, 0.01
        %v823 = vsel %vm821, %v818, %v822
        %v824 = vld [vmem:[#allocation10] sm:$0xff]
        %v825 = vld [vmem:[#allocation10 + $0x8] sm:$0xff]
        %v826 = vld [vmem:[#allocation10 + $0x10] sm:$0xff]
        %v827 = vld [vmem:[#allocation10 + $0x18] sm:$0xff]
        %v828 = vld [vmem:[#allocation10 + $0x20] sm:$0xff]
        %v829 = vld [vmem:[#allocation10 + $0x28] sm:$0xff]
        %v830 = vld [vmem:[#allocation10 + $0x30] sm:$0xff]
        %v831 = vld [vmem:[#allocation10 + $0x38] sm:$0xff]
        %v832 = vld [vmem:[#allocation10 + $0x40] sm:$0xff]
        %v833 = vld [vmem:[#allocation10 + $0x48] sm:$0xff]
        %v834 = vld [vmem:[#allocation10 + $0x50] sm:$0xff]
        %v835 = vld [vmem:[#allocation10 + $0x58] sm:$0xff]
        %v836 = vld [vmem:[#allocation10 + $0x60] sm:$0xff]
        %v837 = vld [vmem:[#allocation10 + $0x68] sm:$0xff]
        %v838 = vld [vmem:[#allocation10 + $0x70] sm:$0xff]
        %v839 = vld [vmem:[#allocation10 + $0x78] sm:$0xff]
        %v840 = vld [vmem:[%s8] sm:$0x1]
        %v842 = vlaneseq
        %v843 = vshrl.u32 %v842, 7
        %v844 = vsub.s32 0, %v843
        %v845 = vrot.slane %v840, %v844
        %847 = vmatprep.subr.mxu0 0.0
        %848 = vmatpush1.msra.mxu0 %v824
        %849 = vmatprep.subr.mxu0 0.0
        %850 = vmatpush1.msra.mxu0 %v825
        %851 = vmatprep.subr.mxu0 0.0
        %852 = vmatpush1.msra.mxu0 %v826
        %853 = vmatprep.subr.mxu0 0.0
        %854 = vmatpush1.msra.mxu0 %v827
        %855 = vmatprep.subr.mxu0 0.0
        %856 = vmatpush1.msra.mxu0 %v828
        %857 = vmatprep.subr.mxu0 0.0
        %858 = vmatpush1.msra.mxu0 %v829
        %859 = vmatprep.subr.mxu0 0.0
        %860 = vmatpush1.msra.mxu0 %v830
        %861 = vmatprep.subr.mxu0 0.0
        %862 = vmatpush1.msra.mxu0 %v831
        %863 = vmatprep.subr.mxu0 0.0
        %864 = vmatpush1.msra.mxu0 %v832
        %865 = vmatprep.subr.mxu0 0.0
        %866 = vmatpush1.msra.mxu0 %v833
        %867 = vmatprep.subr.mxu0 0.0
        %868 = vmatpush1.msra.mxu0 %v834
        %869 = vmatprep.subr.mxu0 0.0
        %870 = vmatpush1.msra.mxu0 %v835
        %871 = vmatprep.subr.mxu0 0.0
        %872 = vmatpush1.msra.mxu0 %v836
        %873 = vmatprep.subr.mxu0 0.0
        %874 = vmatpush1.msra.mxu0 %v837
        %875 = vmatprep.subr.mxu0 0.0
        %876 = vmatpush1.msra.mxu0 %v838
        %877 = vmatprep.subr.mxu0 0.0
        %878 = vmatpush1.msra.mxu0 %v839
        %879 = vmatprep.subr.mxu0 0.0
        %880 = vmatpush1.msra.mxu0 0.0
        %881 = vmatprep.subr.mxu0 0.0
        %882 = vmatpush1.msra.mxu0 0.0
        %883 = vmatprep.subr.mxu0 0.0
        %884 = vmatpush1.msra.mxu0 0.0
        %885 = vmatprep.subr.mxu0 0.0
        %886 = vmatpush1.msra.mxu0 0.0
        %887 = vmatprep.subr.mxu0 0.0
        %888 = vmatpush1.msra.mxu0 0.0
        %889 = vmatprep.subr.mxu0 0.0
        %890 = vmatpush1.msra.mxu0 0.0
        %891 = vmatprep.subr.mxu0 0.0
        %892 = vmatpush1.msra.mxu0 0.0
        %893 = vmatprep.subr.mxu0 0.0
        %894 = vmatpush1.msra.mxu0 0.0
        %895 = vmatprep.subr.mxu0 0.0
        %896 = vmatpush1.msra.mxu0 0.0
        %897 = vmatprep.subr.mxu0 0.0
        %898 = vmatpush1.msra.mxu0 0.0
        %899 = vmatprep.subr.mxu0 0.0
        %900 = vmatpush1.msra.mxu0 0.0
        %901 = vmatprep.subr.mxu0 0.0
        %902 = vmatpush1.msra.mxu0 0.0
        %903 = vmatprep.subr.mxu0 0.0
        %904 = vmatpush1.msra.mxu0 0.0
        %905 = vmatprep.subr.mxu0 0.0
        %906 = vmatpush1.msra.mxu0 0.0
        %907 = vmatprep.subr.mxu0 0.0
        %908 = vmatpush1.msra.mxu0 0.0
        %909 = vmatprep.subr.mxu0 0.0
        %910 = vmatpush1.msra.mxu0 0.0
        %911 = vmatprep.mubr.f32.mxu0 0.0
        %912 = vmatmul.mubr.f32.gmra.mrb[0].mxu0 %v823
        %v913 = vpop.f32.mrb[0].mxu0
        %v914 = vadd.f32 %v845, %v913
        %v915 = vpop.f32.mrb[0].mxu0
        %916 = vdwg.mxu0
        %vm917 = vcmp.ge.f32.partialorder %v914, 0.0
        %v918 = vmul.f32 %v914, 0.01
        %v919 = vsel %vm917, %v914, %v918
        %v920 = vld [vmem:[#allocation11] sm:$0xff]
        %v921 = vld [vmem:[#allocation11 + $0x8] sm:$0xff]
        %v922 = vld [vmem:[#allocation11 + $0x10] sm:$0xff]
        %v923 = vld [vmem:[#allocation11 + $0x18] sm:$0xff]
        %v924 = vld [vmem:[#allocation11 + $0x20] sm:$0xff]
        %v925 = vld [vmem:[#allocation11 + $0x28] sm:$0xff]
        %v926 = vld [vmem:[#allocation11 + $0x30] sm:$0xff]
        %v927 = vld [vmem:[#allocation11 + $0x38] sm:$0xff]
        %v928 = vld [vmem:[#allocation11 + $0x40] sm:$0xff]
        %v929 = vld [vmem:[#allocation11 + $0x48] sm:$0xff]
        %v930 = vld [vmem:[#allocation11 + $0x50] sm:$0xff]
        %v931 = vld [vmem:[#allocation11 + $0x58] sm:$0xff]
        %v932 = vld [vmem:[#allocation11 + $0x60] sm:$0xff]
        %v933 = vld [vmem:[#allocation11 + $0x68] sm:$0xff]
        %v934 = vld [vmem:[#allocation11 + $0x70] sm:$0xff]
        %v935 = vld [vmem:[#allocation11 + $0x78] sm:$0xff]
        %v936 = vld [vmem:[%s10] sm:$0x1]
        %v938 = vlaneseq
        %v939 = vshrl.u32 %v938, 7
        %v940 = vsub.s32 0, %v939
        %v941 = vrot.slane %v936, %v940
        %943 = vmatprep.subr.mxu0 0.0
        %944 = vmatpush1.msra.mxu0 %v920
        %945 = vmatprep.subr.mxu0 0.0
        %946 = vmatpush1.msra.mxu0 %v921
        %947 = vmatprep.subr.mxu0 0.0
        %948 = vmatpush1.msra.mxu0 %v922
        %949 = vmatprep.subr.mxu0 0.0
        %950 = vmatpush1.msra.mxu0 %v923
        %951 = vmatprep.subr.mxu0 0.0
        %952 = vmatpush1.msra.mxu0 %v924
        %953 = vmatprep.subr.mxu0 0.0
        %954 = vmatpush1.msra.mxu0 %v925
        %955 = vmatprep.subr.mxu0 0.0
        %956 = vmatpush1.msra.mxu0 %v926
        %957 = vmatprep.subr.mxu0 0.0
        %958 = vmatpush1.msra.mxu0 %v927
        %959 = vmatprep.subr.mxu0 0.0
        %960 = vmatpush1.msra.mxu0 %v928
        %961 = vmatprep.subr.mxu0 0.0
        %962 = vmatpush1.msra.mxu0 %v929
        %963 = vmatprep.subr.mxu0 0.0
        %964 = vmatpush1.msra.mxu0 %v930
        %965 = vmatprep.subr.mxu0 0.0
        %966 = vmatpush1.msra.mxu0 %v931
        %967 = vmatprep.subr.mxu0 0.0
        %968 = vmatpush1.msra.mxu0 %v932
        %969 = vmatprep.subr.mxu0 0.0
        %970 = vmatpush1.msra.mxu0 %v933
        %971 = vmatprep.subr.mxu0 0.0
        %972 = vmatpush1.msra.mxu0 %v934
        %973 = vmatprep.subr.mxu0 0.0
        %974 = vmatpush1.msra.mxu0 %v935
        %975 = vmatprep.subr.mxu0 0.0
        %976 = vmatpush1.msra.mxu0 0.0
        %977 = vmatprep.subr.mxu0 0.0
        %978 = vmatpush1.msra.mxu0 0.0
        %979 = vmatprep.subr.mxu0 0.0
        %980 = vmatpush1.msra.mxu0 0.0
        %981 = vmatprep.subr.mxu0 0.0
        %982 = vmatpush1.msra.mxu0 0.0
        %983 = vmatprep.subr.mxu0 0.0
        %984 = vmatpush1.msra.mxu0 0.0
        %985 = vmatprep.subr.mxu0 0.0
        %986 = vmatpush1.msra.mxu0 0.0
        %987 = vmatprep.subr.mxu0 0.0
        %988 = vmatpush1.msra.mxu0 0.0
        %989 = vmatprep.subr.mxu0 0.0
        %990 = vmatpush1.msra.mxu0 0.0
        %991 = vmatprep.subr.mxu0 0.0
        %992 = vmatpush1.msra.mxu0 0.0
        %993 = vmatprep.subr.mxu0 0.0
        %994 = vmatpush1.msra.mxu0 0.0
        %995 = vmatprep.subr.mxu0 0.0
        %996 = vmatpush1.msra.mxu0 0.0
        %997 = vmatprep.subr.mxu0 0.0
        %998 = vmatpush1.msra.mxu0 0.0
        %999 = vmatprep.subr.mxu0 0.0
        %1000 = vmatpush1.msra.mxu0 0.0
        %1001 = vmatprep.subr.mxu0 0.0
        %1002 = vmatpush1.msra.mxu0 0.0
        %1003 = vmatprep.subr.mxu0 0.0
        %1004 = vmatpush1.msra.mxu0 0.0
        %1005 = vmatprep.subr.mxu0 0.0
        %1006 = vmatpush1.msra.mxu0 0.0
        %1007 = vmatprep.mubr.f32.mxu0 0.0
        %1008 = vmatmul.mubr.f32.gmra.mrb[0].mxu0 %v919
        %v1009 = vpop.f32.mrb[0].mxu0
        %v1010 = vadd.f32 %v941, %v1009
        %v1011 = vpop.f32.mrb[0].mxu0
        %1012 = vdwg.mxu0
        %vm1013 = vcmp.ge.f32.partialorder %v1010, 0.0
        %v1014 = vmul.f32 %v1010, 0.01
        %v1015 = vsel %vm1013, %v1010, %v1014
        %v1016 = vld [vmem:[#allocation13] sm:$0xff]
        %v1017 = vld [vmem:[#allocation13 + $0x8] sm:$0xff]
        %v1018 = vld [vmem:[#allocation13 + $0x10] sm:$0xff]
        %v1019 = vld [vmem:[#allocation13 + $0x18] sm:$0xff]
        %v1020 = vld [vmem:[#allocation13 + $0x20] sm:$0xff]
        %v1021 = vld [vmem:[#allocation13 + $0x28] sm:$0xff]
        %v1022 = vld [vmem:[#allocation13 + $0x30] sm:$0xff]
        %v1023 = vld [vmem:[#allocation13 + $0x38] sm:$0xff]
        %v1024 = vld [vmem:[#allocation13 + $0x40] sm:$0xff]
        %v1025 = vld [vmem:[#allocation13 + $0x48] sm:$0xff]
        %v1026 = vld [vmem:[#allocation13 + $0x50] sm:$0xff]
        %v1027 = vld [vmem:[#allocation13 + $0x58] sm:$0xff]
        %v1028 = vld [vmem:[#allocation13 + $0x60] sm:$0xff]
        %v1029 = vld [vmem:[#allocation13 + $0x68] sm:$0xff]
        %v1030 = vld [vmem:[#allocation13 + $0x70] sm:$0xff]
        %v1031 = vld [vmem:[#allocation13 + $0x78] sm:$0xff]
        %v1032 = vld [vmem:[%s12] sm:$0x1]
        %v1034 = vlaneseq
        %v1035 = vshrl.u32 %v1034, 7
        %v1036 = vsub.s32 0, %v1035
        %v1037 = vrot.slane %v1032, %v1036
        %1039 = vmatprep.subr.mxu0 0.0
        %1040 = vmatpush1.msra.mxu0 %v1016
        %1041 = vmatprep.subr.mxu0 0.0
        %1042 = vmatpush1.msra.mxu0 %v1017
        %1043 = vmatprep.subr.mxu0 0.0
        %1044 = vmatpush1.msra.mxu0 %v1018
        %1045 = vmatprep.subr.mxu0 0.0
        %1046 = vmatpush1.msra.mxu0 %v1019
        %1047 = vmatprep.subr.mxu0 0.0
        %1048 = vmatpush1.msra.mxu0 %v1020
        %1049 = vmatprep.subr.mxu0 0.0
        %1050 = vmatpush1.msra.mxu0 %v1021
        %1051 = vmatprep.subr.mxu0 0.0
        %1052 = vmatpush1.msra.mxu0 %v1022
        %1053 = vmatprep.subr.mxu0 0.0
        %1054 = vmatpush1.msra.mxu0 %v1023
        %1055 = vmatprep.subr.mxu0 0.0
        %1056 = vmatpush1.msra.mxu0 %v1024
        %1057 = vmatprep.subr.mxu0 0.0
        %1058 = vmatpush1.msra.mxu0 %v1025
        %1059 = vmatprep.subr.mxu0 0.0
        %1060 = vmatpush1.msra.mxu0 %v1026
        %1061 = vmatprep.subr.mxu0 0.0
        %1062 = vmatpush1.msra.mxu0 %v1027
        %1063 = vmatprep.subr.mxu0 0.0
        %1064 = vmatpush1.msra.mxu0 %v1028
        %1065 = vmatprep.subr.mxu0 0.0
        %1066 = vmatpush1.msra.mxu0 %v1029
        %1067 = vmatprep.subr.mxu0 0.0
        %1068 = vmatpush1.msra.mxu0 %v1030
        %1069 = vmatprep.subr.mxu0 0.0
        %1070 = vmatpush1.msra.mxu0 %v1031
        %1071 = vmatprep.subr.mxu0 0.0
        %1072 = vmatpush1.msra.mxu0 0.0
        %1073 = vmatprep.subr.mxu0 0.0
        %1074 = vmatpush1.msra.mxu0 0.0
        %1075 = vmatprep.subr.mxu0 0.0
        %1076 = vmatpush1.msra.mxu0 0.0
        %1077 = vmatprep.subr.mxu0 0.0
        %1078 = vmatpush1.msra.mxu0 0.0
        %1079 = vmatprep.subr.mxu0 0.0
        %1080 = vmatpush1.msra.mxu0 0.0
        %1081 = vmatprep.subr.mxu0 0.0
        %1082 = vmatpush1.msra.mxu0 0.0
        %1083 = vmatprep.subr.mxu0 0.0
        %1084 = vmatpush1.msra.mxu0 0.0
        %1085 = vmatprep.subr.mxu0 0.0
        %1086 = vmatpush1.msra.mxu0 0.0
        %1087 = vmatprep.subr.mxu0 0.0
        %1088 = vmatpush1.msra.mxu0 0.0
        %1089 = vmatprep.subr.mxu0 0.0
        %1090 = vmatpush1.msra.mxu0 0.0
        %1091 = vmatprep.subr.mxu0 0.0
        %1092 = vmatpush1.msra.mxu0 0.0
        %1093 = vmatprep.subr.mxu0 0.0
        %1094 = vmatpush1.msra.mxu0 0.0
        %1095 = vmatprep.subr.mxu0 0.0
        %1096 = vmatpush1.msra.mxu0 0.0
        %1097 = vmatprep.subr.mxu0 0.0
        %1098 = vmatpush1.msra.mxu0 0.0
        %1099 = vmatprep.subr.mxu0 0.0
        %1100 = vmatpush1.msra.mxu0 0.0
        %1101 = vmatprep.subr.mxu0 0.0
        %1102 = vmatpush1.msra.mxu0 0.0
        %1103 = vmatprep.mubr.f32.mxu0 0.0
        %1104 = vmatmul.mubr.f32.gmra.mrb[0].mxu0 %v1015
        %v1105 = vpop.f32.mrb[0].mxu0
        %v1106 = vadd.f32 %v1037, %v1105
        %v1107 = vpop.f32.mrb[0].mxu0
        %1108 = vdwg.mxu0
        %1109 = vst [vmem:[%s542] sm:$0xff] %v1106
        %s1110 = sand.u32 %s319, 1
        %s1111 = scalar_lea.sflag [#allocation4], %s1110
        %s1112 = sand.u32 %s319, 1
        %s1113 = smul.addr %s1112, 8
        %s1114 = scalar_lea.vmem [#allocation14], %s1113
        // Predicated region
        $region101: #{tpu_custom_call.1} parent=71 // pred_check
          %p1115 = pneg %p329
        $region102: #{tpu_custom_call.1} parent=71 // pred_check_branch
          %1117 = sbr.rel (%p1115) target = $region104
        $region103: #{tpu_custom_call.1} parent=71 // pred_region
          %s1119 = ssub.s32 128, 128
          %1120 = vsyncadd %s1111, %s1119
          %s1121 = smul.addr %s33, 128
          %s1122 = scalar_lea.hbm %s13, %s1121
          %s1124 = sshll.u32 %s1114, 4
          %s1125 = int_to_ptr.vmem [resolvable:$true] %s1124
          %1127 = dma.vmem_to_hbm [thread:$0]  %s1125, 128, %s1122, %s1111
        $region104: #{tpu_custom_call.1} parent=71 // pred_fallthru
          _
      $region72: #{tpu_custom_call.1} parent=5 // pred_fallthru
        _
      %p1128 = scmp.le.s32.totalorder 2, %s28
      // Predicated region
      $region105: #{tpu_custom_call.1} parent=5 // pred_check
        %p1129 = pneg %p1128
      $region106: #{tpu_custom_call.1} parent=5 // pred_check_branch
        %1131 = sbr.rel (%p1129) target = $region108
      $region107: #{tpu_custom_call.1} parent=5 // pred_region
        %s1132 = ssub.s32 %s28, 2
        // Predicated region
        $region109: #{tpu_custom_call.1} parent=107 // pred_check
          %p1133 = pneg %p335
        $region110: #{tpu_custom_call.1} parent=107 // pred_check_branch
          %1135 = sbr.rel (%p1133) target = $region112
        $region111: #{tpu_custom_call.1} parent=107 // pred_region
          %s1136 = sand.u32 %s320, 1
          %s1137 = scalar_lea.sflag [#allocation4], %s1136
          %s1138 = sand.u32 %s320, 1
          %s1139 = smul.addr %s1138, 8
          %s1140 = scalar_lea.vmem [#allocation14], %s1139
          %1141 = dma.done %s1137, 128
        $region112: #{tpu_custom_call.1} parent=107 // pred_fallthru
          _
      $region108: #{tpu_custom_call.1} parent=5 // pred_fallthru
        _
    $region6: #{tpu_custom_call.1} parent=1 // loop_footer
      %s32 = sadd.s32 1, %s28
    $region7: #{tpu_custom_call.1} parent=1 // loop_footer_branch
      %27 = sbr.rel target = $region3
    $region8: #{tpu_custom_call.1} parent=1 // loop_exit
      _
    %1142 = vsyncpa [#allocation3], 1
    %s1143 = scalar_lea.sflag [#allocation3], 1
    %1144 = vsyncpa %s1143, 1
    %1145 = vsyncpa [#allocation6], 1
    %1146 = vsyncpa [#allocation9], 1
    %1147 = vsyncpa [#allocation12], 1
    %1148 = vsyncpa [#allocation4], 1
    %s1149 = scalar_lea.sflag [#allocation4], 1
    %1150 = vsyncpa %s1149, 1

</llo_original>
